<compile_context>
chip_gen: v7x
topology: tpu7x:2x2x1
jax: 0.10.0
libtpu: 0.0.40
codegen_flags: <defaults>
</compile_context>

<pallas_src>
import functools

import jax
import jax.numpy as jnp
from jax.experimental import pallas as pl
from jax.experimental.pallas import tpu as pltpu


# ------------------------------------------------------------------------------
# Kernels
# ------------------------------------------------------------------------------
def _tree_max(vals):
    """Pairwise (log-depth) max reduction of a list of equal-shaped arrays."""
    while len(vals) > 1:
        nxt = [jnp.maximum(vals[i], vals[i + 1]) for i in range(0, len(vals) - 1, 2)]
        if len(vals) % 2:
            nxt.append(vals[-1])
        vals = nxt
    return vals[0]


def _maxpool_strided_kernel(x_ref, o_ref, *, k, tl):
    """Primary kernel: in-kernel window deinterleave via lane-strided ref loads.

    x_ref : (bn, ct, tl*k)  lane-dense input slab (k interleaved window phases)
    o_ref : (bn, ct, tl)    lane-dense pooled output
    """
    parts = [x_ref[:, :, pl.ds(j, tl, stride=k)] for j in range(k)]
    o_ref[...] = _tree_max(parts)


def _maxpool_window_kernel(xw_ref, o_ref, *, k):
    """Fallback kernel: k pre-windowed slabs, pure elementwise VPU maxima.

    xw_ref : (bn, k, ct, tl)
    o_ref  : (bn, ct, tl)
    """
    parts = [xw_ref[:, j] for j in range(k)]
    o_ref[...] = _tree_max(parts)


# ------------------------------------------------------------------------------
# Block-shape selection
# ------------------------------------------------------------------------------
def _choose_blocks(N, C, l_out, k, itemsize):
    """Pick (bn, ct, tl) so double-buffered in+out blocks stay <= ~16 MiB while
    each grid step still moves >= ~1-2 MiB (per-step overhead amortization)."""
    budget = 16 << 20

    def nbytes(bn, ct, tl):
        return 2 * (k + 1) * bn * ct * tl * itemsize   # double-buffered in + out

    bn = 1
    ct = C
    tl = l_out if l_out <= 2048 else 2048              # full dim or multiple of 128

    # shrink lane tile first (multiples of 128, never below 128)
    while nbytes(bn, ct, tl) > budget and tl > 128:
        tl = max(128, ((tl // 2) // 128) * 128)

    # then tile channels (multiples of 8) if C*k is very large
    if nbytes(bn, ct, tl) > budget and C > 8:
        ct_cap = budget // (2 * (k + 1) * bn * tl * itemsize)
        ct = min(C, max(8, (ct_cap // 8) * 8))

    # fatten with extra batches when blocks are small (small C / small l_out)
    if N > 1:
        cur = nbytes(1, ct, tl)
        if cur < (2 << 20):
            bn = min(N, max(1, (2 << 20) // max(cur, 1)))
            while nbytes(bn, ct, tl) > budget and bn > 1:
                bn -= 1
    return bn, ct, tl


def _vmem_limit(blk_total_bytes):
    # blocks are budgeted <= 16 MiB; keep the scoped limit well under v7x's
    # 64 MiB physical VMEM while giving the compiler headroom.
    return int(min(48 << 20, max(24 << 20, 2 * blk_total_bytes)))


# ------------------------------------------------------------------------------
# Pallas-call builders (jitted per static config)
# ------------------------------------------------------------------------------
@functools.partial(
    jax.jit, static_argnames=("k", "l_out", "pad_left", "pad_right", "bn", "ct", "tl"))
def _pool_strided(x, *, k, l_out, pad_left, pad_right, bn, ct, tl):
    N, C, _ = x.shape
    itemsize = x.dtype.itemsize
    x_in = x
    if pad_left or pad_right:
        x_in = jnp.pad(x, ((0, 0), (0, 0), (pad_left, pad_right)))
    L_in = x_in.shape[2]

    # BlockSpec lane-dim legality: block last dim must be a multiple of 128 or
    # span the full array dim.  Slice only when necessary (fuses with the pad).
    if (tl * k) % 128 != 0 and l_out * k != L_in:
        x_in = x_in[:, :, : l_out * k]

    blk_total = 2 * (k + 1) * bn * ct * tl * itemsize
    grid = (pl.cdiv(l_out, tl), pl.cdiv(N, bn), pl.cdiv(C, ct))

    return pl.pallas_call(
        functools.partial(_maxpool_strided_kernel, k=k, tl=tl),
        out_shape=jax.ShapeDtypeStruct((N, C, l_out), x.dtype),
        grid=grid,
        in_specs=[pl.BlockSpec((bn, ct, tl * k), lambda t, n, c: (n, c, t))],
        out_specs=pl.BlockSpec((bn, ct, tl), lambda t, n, c: (n, c, t)),
        compiler_params=pltpu.CompilerParams(
            dimension_semantics=("parallel", "parallel", "parallel"),
            vmem_limit_bytes=_vmem_limit(blk_total)),
        cost_estimate=pl.CostEstimate(
            flops=N * C * l_out * max(k - 1, 1),
            transcendentals=0,
            bytes_accessed=N * C * l_out * (k + 1) * itemsize),
    )(x_in)


@functools.partial(
    jax.jit,
    static_argnames=("k", "l_out", "pad_left", "pad_right", "bn", "ct", "tl",
                     "allow_fusion"))
def _pool_windowed(x, *, k, l_out, pad_left, pad_right, bn, ct, tl, allow_fusion):
    N, C, _ = x.shape
    itemsize = x.dtype.itemsize
    x_in = x
    if pad_left or pad_right:
        x_in = jnp.pad(x, ((0, 0), (0, 0), (pad_left, pad_right)))
    x_eff = x_in[:, :, : l_out * k] if x_in.shape[2] != l_out * k else x_in

    # Single data-movement pass (slice + reshape + transpose fuse in XLA); with
    # allow_input_fusion XLA may additionally fuse it into the pallas operand.
    xw = jnp.transpose(x_eff.reshape(N, C, l_out, k), (0, 3, 1, 2))  # (N,k,C,l_out)

    blk_total = 2 * (k + 1) * bn * ct * tl * itemsize
    grid = (pl.cdiv(l_out, tl), pl.cdiv(N, bn), pl.cdiv(C, ct))

    cp_kwargs = dict(
        dimension_semantics=("parallel", "parallel", "parallel"),
        vmem_limit_bytes=_vmem_limit(blk_total))
    if allow_fusion:
        cp_kwargs["allow_input_fusion"] = [True]

    return pl.pallas_call(
        functools.partial(_maxpool_window_kernel, k=k),
        out_shape=jax.ShapeDtypeStruct((N, C, l_out), x.dtype),
        grid=grid,
        in_specs=[pl.BlockSpec((bn, k, ct, tl), lambda t, n, c: (n, 0, c, t))],
        out_specs=pl.BlockSpec((bn, ct, tl), lambda t, n, c: (n, c, t)),
        compiler_params=pltpu.CompilerParams(**cp_kwargs),
        cost_estimate=pl.CostEstimate(
            flops=N * C * l_out * max(k - 1, 1),
            transcendentals=0,
            bytes_accessed=N * C * l_out * (k + 1) * itemsize),
    )(xw)


# ------------------------------------------------------------------------------
# Public wrapper (implementation selection cached per static config)
# ------------------------------------------------------------------------------
_IMPL_CACHE = {}   # config -> best implementation level that compiled


def maxpool1d_pad_same(x, kernel_size):
    """MyMaxPool1dPadSame_U forward.  x: (N, C, L) -> (N, C, L_out)."""
    k = int(kernel_size)
    N, C, L = x.shape

    if L % 2 == 0:
        pad_left = pad_right = 0
        l_out = (L - k) // k + 1
    else:
        p = max(0, k - 1)
        pad_left = p // 2
        pad_right = p - pad_left
        l_out = (L + p - k) // k + 1
    assert l_out >= 1, "input length too short for this kernel_size"

    bn, ct, tl = _choose_blocks(N, C, l_out, k, x.dtype.itemsize)
    common = dict(k=k, l_out=l_out, pad_left=pad_left, pad_right=pad_right,
                  bn=bn, ct=ct, tl=tl)

    impls = (
        lambda: _pool_strided(x, **common),
        lambda: _pool_windowed(x, allow_fusion=True, **common),
        lambda: _pool_windowed(x, allow_fusion=False, **common),
    )

    cfg = (N, C, L, k, str(x.dtype), bn, ct, tl)
    start = _IMPL_CACHE.get(cfg, 0)
    for lvl in range(start, len(impls)):
        try:
            out = impls[lvl]()
            _IMPL_CACHE[cfg] = lvl
            return out
        except Exception:
            if lvl == len(impls) - 1:
                raise
    # unreachable
    raise RuntimeError("all maxpool implementations failed")


class MyMaxPool1dPadSamePallas:
    """Pallas-TPU equivalent of MyMaxPool1dPadSame_U."""

    def __init__(self, kernel_size):
        self.kernel_size = int(kernel_size)

    def __call__(self, x):
        return maxpool1d_pad_same(x, self.kernel_size)


# ------------------------------------------------------------------------------
# Plain-JAX reference mirroring the PyTorch module, for validation.
# ------------------------------------------------------------------------------
def maxpool1d_pad_same_reference(x, kernel_size):
    k = int(kernel_size)
    N, C, L = x.shape
    if L % 2 == 0:
        l_out = (L - k) // k + 1
        xe = x[:, :, : l_out * k]
    else:
        p = max(0, k - 1)
        xe = jnp.pad(x, ((0, 0), (0, 0), (p // 2, p - p // 2)))
        l_out = (L + p - k) // k + 1
        xe = xe[:, :, : l_out * k]
    return xe.reshape(N, C, l_out, k).max(axis=-1)


if __name__ == "__main__":
    key = jax.random.PRNGKey(0)
    cases = [
        # (batch, channels, length, kernel_size)
        (2, 4, 16, 2),     # even length, L % k == 0            -> plain pool
        (2, 4, 15, 3),     # odd length                         -> SAME zero-pad branch
        (2, 8, 514, 4),    # even length, L % k != 0            -> floor-mode tail drop
        (1, 6, 1025, 5),   # odd length, N == 1                 -> pad + in-call slice
    ]
    for i, (n, c, l, k) in enumerate(cases):
        key, sub = jax.random.split(key)
        x = jax.random.normal(sub, (n, c, l), jnp.float32)
        pool = MyMaxPool1dPadSamePallas(kernel_size=k)
        out = jax.block_until_ready(pool(x))
        ref = jax.block_until_ready(maxpool1d_pad_same_reference(x, k))
        assert out.shape == ref.shape, (out.shape, ref.shape)
        if not jnp.allclose(out, ref, atol=1e-6, rtol=1e-6):
            raise AssertionError(
                f"case {i}: mismatch vs reference, "
                f"max abs diff = {jnp.max(jnp.abs(out - ref))}")
    print("KERNEL_OK")
</pallas_src>

<mosaic_0001>
module attributes {stable_mosaic.version = 11 : i64} {
  func.func @_maxpool_strided_kernel(%arg0: i32, %arg1: i32, %arg2: i32, %arg3: memref<2x4x16xf32, #tpu.memory_space<vmem>>, %arg4: memref<2x4x8xf32, #tpu.memory_space<vmem>>) attributes {dimension_semantics = [#tpu.dimension_semantics<parallel>, #tpu.dimension_semantics<parallel>, #tpu.dimension_semantics<parallel>], iteration_bounds = array<i64: 1, 1, 1>, scalar_prefetch = 0 : i64, scratch_operands = 0 : i64, tpu.core_type = #tpu.core_type<tc>, window_params = [{transform_indices = @transform_0, window_bounds = array<i64: 2, 4, 16>}, {transform_indices = @transform_1, window_bounds = array<i64: 2, 4, 8>}]} {
    %c0 = arith.constant 0 : index
    %c0_0 = arith.constant 0 : index
    %c0_1 = arith.constant 0 : index
    %0 = tpu.strided_load %arg3[%c0, %c0_0, %c0_1] {strides = array<i32: 1, 1, 2>} : memref<2x4x16xf32, #tpu.memory_space<vmem>>, vector<2x4x8xf32>
    %c0_2 = arith.constant 0 : index
    %c0_3 = arith.constant 0 : index
    %c1 = arith.constant 1 : index
    %1 = tpu.strided_load %arg3[%c0_2, %c0_3, %c1] {strides = array<i32: 1, 1, 2>} : memref<2x4x16xf32, #tpu.memory_space<vmem>>, vector<2x4x8xf32>
    %2 = arith.maximumf %0, %1 : vector<2x4x8xf32>
    %c0_4 = arith.constant 0 : index
    %c0_5 = arith.constant 0 : index
    %c0_6 = arith.constant 0 : index
    %3 = vector.load %arg4[%c0_4, %c0_5, %c0_6] : memref<2x4x8xf32, #tpu.memory_space<vmem>>, vector<2x4x8xf32>
    tpu.vector_store %arg4[%c0_4, %c0_5, %c0_6], %2 {strides = array<i32>} : memref<2x4x8xf32, #tpu.memory_space<vmem>>, vector<2x4x8xf32>,
    return
  }
  func.func @transform_0(%arg0: i32, %arg1: i32, %arg2: i32) -> (i32, i32, i32) {
    %c0_i32 = arith.constant 0 : i32
    return %arg1, %arg2, %arg0 : i32, i32, i32
  }
  func.func @transform_1(%arg0: i32, %arg1: i32, %arg2: i32) -> (i32, i32, i32) {
    %c0_i32 = arith.constant 0 : i32
    return %arg1, %arg2, %arg0 : i32, i32, i32
  }
}

module attributes {stable_mosaic.version = 11 : i64} {
  func.func @_maxpool_window_kernel(%arg0: i32, %arg1: i32, %arg2: i32, %arg3: memref<2x2x4x8xf32, #tpu.memory_space<vmem>>, %arg4: memref<2x4x8xf32, #tpu.memory_space<vmem>>) attributes {dimension_semantics = [#tpu.dimension_semantics<parallel>, #tpu.dimension_semantics<parallel>, #tpu.dimension_semantics<parallel>], iteration_bounds = array<i64: 1, 1, 1>, scalar_prefetch = 0 : i64, scratch_operands = 0 : i64, tpu.core_type = #tpu.core_type<tc>, window_params = [{transform_indices = @transform_0, window_bounds = array<i64: 2, 2, 4, 8>}, {transform_indices = @transform_1, window_bounds = array<i64: 2, 4, 8>}]} {
    %c0 = arith.constant 0 : index
    %c0_0 = arith.constant 0 : index
    %c0_1 = arith.constant 0 : index
    %c0_2 = arith.constant 0 : index
    %0 = vector.load %arg3[%c0, %c0_0, %c0_1, %c0_2] : memref<2x2x4x8xf32, #tpu.memory_space<vmem>>, vector<2x1x4x8xf32>
    %1 = vector.shape_cast %0 : vector<2x1x4x8xf32> to vector<2x4x8xf32>
    %c0_3 = arith.constant 0 : index
    %c1 = arith.constant 1 : index
    %c0_4 = arith.constant 0 : index
    %c0_5 = arith.constant 0 : index
    %2 = vector.load %arg3[%c0_3, %c1, %c0_4, %c0_5] : memref<2x2x4x8xf32, #tpu.memory_space<vmem>>, vector<2x1x4x8xf32>
    %3 = vector.shape_cast %2 : vector<2x1x4x8xf32> to vector<2x4x8xf32>
    %4 = arith.maximumf %1, %3 : vector<2x4x8xf32>
    %c0_6 = arith.constant 0 : index
    %c0_7 = arith.constant 0 : index
    %c0_8 = arith.constant 0 : index
    %5 = vector.load %arg4[%c0_6, %c0_7, %c0_8] : memref<2x4x8xf32, #tpu.memory_space<vmem>>, vector<2x4x8xf32>
    tpu.vector_store %arg4[%c0_6, %c0_7, %c0_8], %4 {strides = array<i32>} : memref<2x4x8xf32, #tpu.memory_space<vmem>>, vector<2x4x8xf32>,
    return
  }
  func.func @transform_0(%arg0: i32, %arg1: i32, %arg2: i32) -> (i32, i32, i32, i32) {
    %c0_i32 = arith.constant 0 : i32
    %c0_i32_0 = arith.constant 0 : i32
    return %arg1, %c0_i32, %arg2, %arg0 : i32, i32, i32, i32
  }
  func.func @transform_1(%arg0: i32, %arg1: i32, %arg2: i32) -> (i32, i32, i32) {
    %c0_i32 = arith.constant 0 : i32
    return %arg1, %arg2, %arg0 : i32, i32, i32
  }
}

module attributes {stable_mosaic.version = 11 : i64} {
  func.func @_maxpool_window_kernel(%arg0: i32, %arg1: i32, %arg2: i32, %arg3: memref<2x2x4x8xf32, #tpu.memory_space<vmem>>, %arg4: memref<2x4x8xf32, #tpu.memory_space<vmem>>) attributes {dimension_semantics = [#tpu.dimension_semantics<parallel>, #tpu.dimension_semantics<parallel>, #tpu.dimension_semantics<parallel>], iteration_bounds = array<i64: 1, 1, 1>, scalar_prefetch = 0 : i64, scratch_operands = 0 : i64, tpu.core_type = #tpu.core_type<tc>, window_params = [{transform_indices = @transform_0, window_bounds = array<i64: 2, 2, 4, 8>}, {transform_indices = @transform_1, window_bounds = array<i64: 2, 4, 8>}]} {
    %c0 = arith.constant 0 : index
    %c0_0 = arith.constant 0 : index
    %c0_1 = arith.constant 0 : index
    %c0_2 = arith.constant 0 : index
    %0 = vector.load %arg3[%c0, %c0_0, %c0_1, %c0_2] : memref<2x2x4x8xf32, #tpu.memory_space<vmem>>, vector<2x1x4x8xf32>
    %1 = vector.shape_cast %0 : vector<2x1x4x8xf32> to vector<2x4x8xf32>
    %c0_3 = arith.constant 0 : index
    %c1 = arith.constant 1 : index
    %c0_4 = arith.constant 0 : index
    %c0_5 = arith.constant 0 : index
    %2 = vector.load %arg3[%c0_3, %c1, %c0_4, %c0_5] : memref<2x2x4x8xf32, #tpu.memory_space<vmem>>, vector<2x1x4x8xf32>
    %3 = vector.shape_cast %2 : vector<2x1x4x8xf32> to vector<2x4x8xf32>
    %4 = arith.maximumf %1, %3 : vector<2x4x8xf32>
    %c0_6 = arith.constant 0 : index
    %c0_7 = arith.constant 0 : index
    %c0_8 = arith.constant 0 : index
    %5 = vector.load %arg4[%c0_6, %c0_7, %c0_8] : memref<2x4x8xf32, #tpu.memory_space<vmem>>, vector<2x4x8xf32>
    tpu.vector_store %arg4[%c0_6, %c0_7, %c0_8], %4 {strides = array<i32>} : memref<2x4x8xf32, #tpu.memory_space<vmem>>, vector<2x4x8xf32>,
    return
  }
  func.func @transform_0(%arg0: i32, %arg1: i32, %arg2: i32) -> (i32, i32, i32, i32) {
    %c0_i32 = arith.constant 0 : i32
    %c0_i32_0 = arith.constant 0 : i32
    return %arg1, %c0_i32, %arg2, %arg0 : i32, i32, i32, i32
  }
  func.func @transform_1(%arg0: i32, %arg1: i32, %arg2: i32) -> (i32, i32, i32) {
    %c0_i32 = arith.constant 0 : i32
    return %arg1, %arg2, %arg0 : i32, i32, i32
  }
}

</mosaic_0001>

<llo_original>
// kernel: _pool_windowed.2
$region0: #{_pool_windowed.2}
  #allocation0 [shape = 'u32[]', space=smem, size = 0x4, offset = 0x4, fixed_abs, tag = 'smem constant byte address 0x4 - core index']
  #allocation1 [shape = 'u32[144,128]{1,0:T(1,128)}', space=vmem, size = 0x12000, scoped, tag = 'internal scratch']
  %s0 = inlined_call_operand.vmem [shape: f32[2,4,8,2], index: 0, kind: input, shape index: {}]
  %s1 = inlined_call_operand.hbm [shape: f32[2,4,8], index: 1, kind: output, shape index: {}]
  %s2 = sld [smem:[#allocation0]]
  $region14: #{_pool_windowed.2} parent=0
    _
  %s4 = ssub.s32 1, %s2
  %s5 = scalar_select 0, %s4, %s2
  $region1: #{_pool_windowed.2} parent=0
    #allocation2 [shape = 'u8[4096]{0}', space=vmem, size = 0x1000, scoped, tag = 'output window, operand 0, single buffered']
    #allocation3 [shape = 's32[1]{0}', space=sflag, size = 0x4, scoped, tag = 'scoped memory for _pool_windowed.2']
    #allocation4 [shape = 'u8[8192]{0}', space=vmem, size = 0x2000, dematerialized = true, scoped, tag = 'FusionAdapter Buffer %fusion.1 = f32[2,2,4,8]{3,2,1,0:T(4,128)} fusion(%param_0.1), kind=kLoop, calls=%fused_computation.1.clone, metadata={op_name="jit(_pool_windowed)/transpose" stack_frame_id=11}']
    %6 = vsyncpa [#allocation3], 0
    // Predicated region
    $region2: #{_pool_windowed.2} parent=1 // pred_check
      _
    $region3: #{_pool_windowed.2} parent=1 // pred_check_branch
      %8 = sbr.rel (0) target = $region5
    $region4: #{_pool_windowed.2} parent=1 // pred_region
      _
    $region5: #{_pool_windowed.2} parent=1 // pred_fallthru
      _
    %v9 = vld [vmem:[%s0] sm:$0xf]
    %11 = vst [vmem:[#allocation4] sm:$0xf] %v9
    %s12 = scalar_lea.vmem %s0, 4
    %v13 = vld [vmem:[%s12] sm:$0xf]
    %s14 = scalar_lea.vmem [#allocation4], 4
    %16 = vst [vmem:[%s14] sm:$0xf] %v13
    %s17 = scalar_lea.vmem %s0, 8
    %v18 = vld [vmem:[%s17] sm:$0xf]
    %s19 = scalar_lea.vmem [#allocation4], 8
    %21 = vst [vmem:[%s19] sm:$0xf] %v18
    %s22 = scalar_lea.vmem %s0, 12
    %v23 = vld [vmem:[%s22] sm:$0xf]
    %s24 = scalar_lea.vmem [#allocation4], 12
    %26 = vst [vmem:[%s24] sm:$0xf] %v23
    %v27 = vld [vmem:[#allocation4] sm:$0xf]
    %v28 = vld [vmem:[#allocation4 + $0x8] sm:$0xf]
    %s29 = scalar_lea.vmem [#allocation4], 4
    %v30 = vld [vmem:[%s29] sm:$0xf]
    %v31 = vld [vmem:[%s29 + $0x8] sm:$0xf]
    %v32 = vmax.f32 %v27, %v30
    %v33 = vmax.f32 %v28, %v31
    %vm34 = vcmask 60416
    %35 = vst.msk [vmem:[#allocation2] sm:$0xf] %vm34, %v32
    %36 = vst.msk [vmem:[#allocation2 + $0x4] sm:$0xf] %vm34, %v33
    // Predicated region
    $region6: #{_pool_windowed.2} parent=1 // pred_check
      _
    $region7: #{_pool_windowed.2} parent=1 // pred_check_branch
      %38 = sbr.rel (0) target = $region9
    $region8: #{_pool_windowed.2} parent=1 // pred_region
      %s40 = ssub.s32 128, 128
      %41 = vsyncadd [#allocation3], %s40
      %s42 = sshll.u32 [#allocation2], 4
      %s43 = int_to_ptr.vmem [resolvable:$true] %s42
      %48 = dma.vmem_to_hbm [thread:$0]  %s43, 128, %s1, [#allocation3], 64, 64, 4
    $region9: #{_pool_windowed.2} parent=1 // pred_fallthru
      _
    // Predicated region
    $region10: #{_pool_windowed.2} parent=1 // pred_check
      _
    $region11: #{_pool_windowed.2} parent=1 // pred_check_branch
      %50 = sbr.rel (0) target = $region13
    $region12: #{_pool_windowed.2} parent=1 // pred_region
      %51 = dma.done [#allocation3], 128
    $region13: #{_pool_windowed.2} parent=1 // pred_fallthru
      _
    %52 = vsyncpa [#allocation3], 1

// kernel: _pool_windowed.1
$region0: #{_pool_windowed.1}
  #allocation0 [shape = 'u32[]', space=smem, size = 0x4, offset = 0x4, fixed_abs, tag = 'smem constant byte address 0x4 - core index']
  #allocation1 [shape = 'u32[144,128]{1,0:T(1,128)}', space=vmem, size = 0x12000, scoped, tag = 'internal scratch']
  %s0 = inlined_call_operand.vmem [shape: f32[2,2,4,8], index: 0, kind: input, shape index: {}]
  %s1 = inlined_call_operand.hbm [shape: f32[2,4,8], index: 1, kind: output, shape index: {}]
  %s2 = sld [smem:[#allocation0]]
  $region14: #{_pool_windowed.1} parent=0
    _
  %s4 = ssub.s32 1, %s2
  %s5 = scalar_select 0, %s4, %s2
  $region1: #{_pool_windowed.1} parent=0
    #allocation2 [shape = 'u8[4096]{0}', space=vmem, size = 0x1000, scoped, tag = 'output window, operand 0, single buffered']
    #allocation3 [shape = 's32[1]{0}', space=sflag, size = 0x4, scoped, tag = 'scoped memory for _pool_windowed.1']
    %6 = vsyncpa [#allocation3], 0
    // Predicated region
    $region2: #{_pool_windowed.1} parent=1 // pred_check
      _
    $region3: #{_pool_windowed.1} parent=1 // pred_check_branch
      %8 = sbr.rel (0) target = $region5
    $region4: #{_pool_windowed.1} parent=1 // pred_region
      _
    $region5: #{_pool_windowed.1} parent=1 // pred_fallthru
      _
    %v9 = vld [vmem:[%s0] sm:$0xf]
    %v10 = vld [vmem:[%s0 + $0x8] sm:$0xf]
    %s11 = scalar_lea.vmem %s0, 4
    %v12 = vld [vmem:[%s11] sm:$0xf]
    %v13 = vld [vmem:[%s11 + $0x8] sm:$0xf]
    %v14 = vmax.f32 %v9, %v12
    %v15 = vmax.f32 %v10, %v13
    %vm16 = vcmask 60416
    %17 = vst.msk [vmem:[#allocation2] sm:$0xf] %vm16, %v14
    %18 = vst.msk [vmem:[#allocation2 + $0x4] sm:$0xf] %vm16, %v15
    // Predicated region
    $region6: #{_pool_windowed.1} parent=1 // pred_check
      _
    $region7: #{_pool_windowed.1} parent=1 // pred_check_branch
      %20 = sbr.rel (0) target = $region9
    $region8: #{_pool_windowed.1} parent=1 // pred_region
      %s22 = ssub.s32 128, 128
      %23 = vsyncadd [#allocation3], %s22
      %s24 = sshll.u32 [#allocation2], 4
      %s25 = int_to_ptr.vmem [resolvable:$true] %s24
      %30 = dma.vmem_to_hbm [thread:$0]  %s25, 128, %s1, [#allocation3], 64, 64, 4
    $region9: #{_pool_windowed.1} parent=1 // pred_fallthru
      _
    // Predicated region
    $region10: #{_pool_windowed.1} parent=1 // pred_check
      _
    $region11: #{_pool_windowed.1} parent=1 // pred_check_branch
      %32 = sbr.rel (0) target = $region13
    $region12: #{_pool_windowed.1} parent=1 // pred_region
      %33 = dma.done [#allocation3], 128
    $region13: #{_pool_windowed.1} parent=1 // pred_fallthru
      _
    %34 = vsyncpa [#allocation3], 1

</llo_original>
